<compile_context>
chip_gen: v5e
topology: v5e:2x2
jax: 0.10.0
libtpu: 0.0.40
codegen_flags: <defaults>
</compile_context>

<pallas_src>
import jax
import jax.numpy as jnp
from jax.experimental import pallas as pl
from jax.experimental.pallas import tpu as pltpu


def vfl_kernel(xa_ref, xb_ref, w_ref, b_ref, out_ref):
    """One batch tile: xa/xb (5, TB) f32; w (88,16) / b (72,1) f32 VMEM-resident slabs."""
    f32 = jnp.float32
    xa = xa_ref[...]                                                      # (5, TB)
    xb = xb_ref[...]                                                      # (5, TB)

    # Bottom layers: two independent Linear(5,10) + ReLU (batch on lanes).
    ha = jnp.dot(w_ref[0:10, 0:5], xa, preferred_element_type=f32) + b_ref[0:10]
    hb = jnp.dot(w_ref[16:26, 0:5], xb, preferred_element_type=f32) + b_ref[16:26]
    ha = jnp.maximum(ha, 0.0)                                             # (10, TB)
    hb = jnp.maximum(hb, 0.0)                                             # (10, TB)

    # Interactive layer: WIA @ a + WIB @ b + (bIA + bIB), then ReLU (exact fusion).
    hi = (jnp.dot(w_ref[32:47, 0:10], ha, preferred_element_type=f32)
          + jnp.dot(w_ref[48:63, 0:10], hb, preferred_element_type=f32)
          + b_ref[32:47])
    hi = jnp.maximum(hi, 0.0)                                             # (15, TB)

    # Top layer: Linear(15,10) + ReLU + Linear(10,2).
    ht = jnp.maximum(
        jnp.dot(w_ref[64:74, 0:15], hi, preferred_element_type=f32) + b_ref[48:58],
        0.0)                                                              # (10, TB)
    out = jnp.dot(w_ref[80:82, 0:10], ht, preferred_element_type=f32) + b_ref[64:66]
    out_ref[...] = out.astype(out_ref.dtype)                              # (2, TB)


def _choose_tb(batch, tb_max):
    """Largest 128-multiple lane tile <= tb_max that still gives >= 2 grid blocks
    (so both v7x TensorCores get work) whenever the batch allows it."""
    units = -(-batch // 128)                 # batch size in 128-lane units
    if units <= 1:
        return 128
    half = -(-units // 2) * 128              # ~half the batch, rounded up to 128
    return min(half, tb_max)


def vfl_forward(inputA, inputB, pk, *, tb=None, tb_max=16384):
    """inputA/inputB: (B, 5) f32.  pk: packed params (pack_params).  Returns (B, 2) f32."""
    B = inputA.shape[0]
    if tb is None:
        tb = _choose_tb(B, tb_max)
    n_blocks = -(-B // tb)
    B_pad = n_blocks * tb

    def prep(x):
        x_t = x.astype(jnp.float32).T                                     # (5, B)
        if B_pad != B:
            x_t = jnp.pad(x_t, ((0, 0), (0, B_pad - B)))
        return x_t

    xa_t, xb_t = prep(inputA), prep(inputB)

    act_spec = pl.BlockSpec((5, tb), lambda i: (0, i))
    w_spec = pl.BlockSpec(pk["w"].shape, lambda i: (0, 0))                # resident
    b_spec = pl.BlockSpec(pk["b"].shape, lambda i: (0, 0))                # resident
    out_spec = pl.BlockSpec((2, tb), lambda i: (0, i))

    flops = 2 * B_pad * (2 * 10 * 5 + 2 * 15 * 10 + 10 * 15 + 2 * 10)
    bytes_accessed = (4 * (int(xa_t.size) + int(xb_t.size))               # f32 inputs
                      + 4 * 2 * B_pad                                     # f32 outputs
                      + 4 * (int(pk["w"].size) + int(pk["b"].size)))      # f32 slabs
    cost = pl.CostEstimate(flops=flops, transcendentals=0,
                           bytes_accessed=int(bytes_accessed))

    out_t = pl.pallas_call(
        vfl_kernel,
        out_shape=jax.ShapeDtypeStruct((2, B_pad), jnp.float32),
        grid=(n_blocks,),
        in_specs=[act_spec, act_spec, w_spec, b_spec],
        out_specs=out_spec,
        compiler_params=pltpu.CompilerParams(dimension_semantics=("parallel",)),
        cost_estimate=cost,
    )(xa_t, xb_t, pk["w"], pk["b"])

    # Drop padded columns and return in the PyTorch (B, 2) layout.
    return out_t[:, :B].T


def init_params(key):
    """PyTorch nn.Linear default init: weight (out,in), bias (out,), U[-1/sqrt(fan_in), +]."""
    dims = {
        "a": (5, 10), "b": (5, 10),
        "ia": (10, 15), "ib": (10, 15),
        "t1": (15, 10), "t2": (10, 2),
    }
    params = {}
    keys = jax.random.split(key, 2 * len(dims))
    for i, (name, (fan_in, fan_out)) in enumerate(dims.items()):
        bound = 1.0 / (fan_in ** 0.5)
        params["w" + name] = jax.random.uniform(
            keys[2 * i], (fan_out, fan_in), jnp.float32, -bound, bound)
        params["b" + name] = jax.random.uniform(
            keys[2 * i + 1], (fan_out,), jnp.float32, -bound, bound)
    return params


def pack_params(p):
    """Pack every weight/bias into one f32 weight slab and one f32 bias slab.

    Row offsets are multiples of 8 so the static in-kernel slices are sublane-aligned:
      weight slab (88,16): WA@[0:10,0:5]  WB@[16:26,0:5]  WIA@[32:47,0:10]
                           WIB@[48:63,0:10]  WT1@[64:74,0:15]  WT2@[80:82,0:10]
      bias   slab (72,1):  bA@[0:10]  bB@[16:26]  (bIA+bIB)@[32:47]
                           bT1@[48:58]  bT2@[64:66]
    """
    w = jnp.zeros((88, 16), jnp.float32)
    w = w.at[0:10, 0:5].set(p["wa"])
    w = w.at[16:26, 0:5].set(p["wb"])
    w = w.at[32:47, 0:10].set(p["wia"])
    w = w.at[48:63, 0:10].set(p["wib"])
    w = w.at[64:74, 0:15].set(p["wt1"])
    w = w.at[80:82, 0:10].set(p["wt2"])

    b = jnp.zeros((72, 1), jnp.float32)
    b = b.at[0:10, 0].set(p["ba"])
    b = b.at[16:26, 0].set(p["bb"])
    b = b.at[32:47, 0].set(p["bia"] + p["bib"])     # exact: the two biases just add
    b = b.at[48:58, 0].set(p["bt1"])
    b = b.at[64:66, 0].set(p["bt2"])
    return {"w": w, "b": b}


def reference_forward(inputA, inputB, p):
    """Pure-JAX float32 reference mirroring the PyTorch module exactly."""
    hp = jax.lax.Precision.HIGHEST
    ha = jnp.maximum(jnp.dot(inputA, p["wa"].T, precision=hp) + p["ba"], 0.0)
    hb = jnp.maximum(jnp.dot(inputB, p["wb"].T, precision=hp) + p["bb"], 0.0)
    hi = jnp.maximum(jnp.dot(ha, p["wia"].T, precision=hp) + p["bia"]
                     + jnp.dot(hb, p["wib"].T, precision=hp) + p["bib"], 0.0)
    ht = jnp.maximum(jnp.dot(hi, p["wt1"].T, precision=hp) + p["bt1"], 0.0)
    return jnp.dot(ht, p["wt2"].T, precision=hp) + p["bt2"]


if __name__ == "__main__":
    key = jax.random.PRNGKey(0)
    k_params, k_a, k_b = jax.random.split(key, 3)

    B = 1000  # not a multiple of 128 -> exercises padding and a 2-block parallel grid
    inputA = jax.random.normal(k_a, (B, 5), jnp.float32)
    inputB = jax.random.normal(k_b, (B, 5), jnp.float32)

    params = init_params(k_params)
    packed = pack_params(params)

    out = vfl_forward(inputA, inputB, packed)
    out = jax.block_until_ready(out)
    assert out.shape == (B, 2)

    ref = reference_forward(inputA, inputB, params)
    assert jnp.allclose(out, ref, atol=2e-3, rtol=2e-3), "mismatch vs JAX f32 reference"

    print("KERNEL_OK")
</pallas_src>

<mosaic_0001>
module attributes {stable_mosaic.version = 11 : i64} {
  func.func @vfl_kernel(%arg0: i32, %arg1: memref<5x512xf32, #tpu.memory_space<vmem>>, %arg2: memref<5x512xf32, #tpu.memory_space<vmem>>, %arg3: memref<88x16xf32, #tpu.memory_space<vmem>>, %arg4: memref<72x1xf32, #tpu.memory_space<vmem>>, %arg5: memref<2x512xf32, #tpu.memory_space<vmem>>) attributes {dimension_semantics = [#tpu.dimension_semantics<parallel>], iteration_bounds = array<i64: 2>, scalar_prefetch = 0 : i64, scratch_operands = 0 : i64, tpu.core_type = #tpu.core_type<tc>, window_params = [{transform_indices = @transform_0, window_bounds = array<i64: 5, 512>}, {transform_indices = @transform_1, window_bounds = array<i64: 5, 512>}, {pipeline_mode = #tpu.pipeline_mode<synchronous>, transform_indices = @transform_2, window_bounds = array<i64: 88, 16>}, {pipeline_mode = #tpu.pipeline_mode<synchronous>, transform_indices = @transform_3, window_bounds = array<i64: 72, 1>}, {transform_indices = @transform_4, window_bounds = array<i64: 2, 512>}]} {
    %c0 = arith.constant 0 : index
    %c0_0 = arith.constant 0 : index
    %0 = vector.load %arg1[%c0, %c0_0] : memref<5x512xf32, #tpu.memory_space<vmem>>, vector<5x512xf32>
    %c0_1 = arith.constant 0 : index
    %c0_2 = arith.constant 0 : index
    %1 = vector.load %arg2[%c0_1, %c0_2] : memref<5x512xf32, #tpu.memory_space<vmem>>, vector<5x512xf32>
    %c0_3 = arith.constant 0 : index
    %c0_4 = arith.constant 0 : index
    %2 = vector.load %arg3[%c0_3, %c0_4] : memref<88x16xf32, #tpu.memory_space<vmem>>, vector<10x5xf32>
    %cst = arith.constant dense<0.000000e+00> : vector<10x512xf32>
    %3 = tpu.matmul %2, %0, %cst {dimension_numbers = #tpu.dot_dimension_numbers<[1], [0], [0], [1], [0, 0, 1, 1], [], []>} : vector<10x5xf32>, vector<5x512xf32>, vector<10x512xf32> -> vector<10x512xf32>
    %c0_5 = arith.constant 0 : index
    %c0_6 = arith.constant 0 : index
    %4 = vector.load %arg4[%c0_5, %c0_6] : memref<72x1xf32, #tpu.memory_space<vmem>>, vector<10x1xf32>
    %5 = vector.broadcast %4 : vector<10x1xf32> to vector<10x512xf32>
    %6 = arith.addf %3, %5 : vector<10x512xf32>
    %c16 = arith.constant 16 : index
    %c0_7 = arith.constant 0 : index
    %7 = vector.load %arg3[%c16, %c0_7] : memref<88x16xf32, #tpu.memory_space<vmem>>, vector<10x5xf32>
    %cst_8 = arith.constant dense<0.000000e+00> : vector<10x512xf32>
    %8 = tpu.matmul %7, %1, %cst_8 {dimension_numbers = #tpu.dot_dimension_numbers<[1], [0], [0], [1], [0, 0, 1, 1], [], []>} : vector<10x5xf32>, vector<5x512xf32>, vector<10x512xf32> -> vector<10x512xf32>
    %c16_9 = arith.constant 16 : index
    %c0_10 = arith.constant 0 : index
    %9 = vector.load %arg4[%c16_9, %c0_10] : memref<72x1xf32, #tpu.memory_space<vmem>>, vector<10x1xf32>
    %10 = vector.broadcast %9 : vector<10x1xf32> to vector<10x512xf32>
    %11 = arith.addf %8, %10 : vector<10x512xf32>
    %cst_11 = arith.constant 0.000000e+00 : f32
    %12 = vector.broadcast %cst_11 : f32 to vector<10x512xf32>
    %13 = arith.maximumf %6, %12 : vector<10x512xf32>
    %cst_12 = arith.constant 0.000000e+00 : f32
    %14 = vector.broadcast %cst_12 : f32 to vector<10x512xf32>
    %15 = arith.maximumf %11, %14 : vector<10x512xf32>
    %c32 = arith.constant 32 : index
    %c0_13 = arith.constant 0 : index
    %16 = vector.load %arg3[%c32, %c0_13] : memref<88x16xf32, #tpu.memory_space<vmem>>, vector<15x10xf32>
    %cst_14 = arith.constant dense<0.000000e+00> : vector<15x512xf32>
    %17 = tpu.matmul %16, %13, %cst_14 {dimension_numbers = #tpu.dot_dimension_numbers<[1], [0], [0], [1], [0, 0, 1, 1], [], []>} : vector<15x10xf32>, vector<10x512xf32>, vector<15x512xf32> -> vector<15x512xf32>
    %c48 = arith.constant 48 : index
    %c0_15 = arith.constant 0 : index
    %18 = vector.load %arg3[%c48, %c0_15] : memref<88x16xf32, #tpu.memory_space<vmem>>, vector<15x10xf32>
    %cst_16 = arith.constant dense<0.000000e+00> : vector<15x512xf32>
    %19 = tpu.matmul %18, %15, %cst_16 {dimension_numbers = #tpu.dot_dimension_numbers<[1], [0], [0], [1], [0, 0, 1, 1], [], []>} : vector<15x10xf32>, vector<10x512xf32>, vector<15x512xf32> -> vector<15x512xf32>
    %20 = arith.addf %17, %19 : vector<15x512xf32>
    %c32_17 = arith.constant 32 : index
    %c0_18 = arith.constant 0 : index
    %21 = vector.load %arg4[%c32_17, %c0_18] : memref<72x1xf32, #tpu.memory_space<vmem>>, vector<15x1xf32>
    %22 = vector.broadcast %21 : vector<15x1xf32> to vector<15x512xf32>
    %23 = arith.addf %20, %22 : vector<15x512xf32>
    %cst_19 = arith.constant 0.000000e+00 : f32
    %24 = vector.broadcast %cst_19 : f32 to vector<15x512xf32>
    %25 = arith.maximumf %23, %24 : vector<15x512xf32>
    %c64 = arith.constant 64 : index
    %c0_20 = arith.constant 0 : index
    %26 = vector.load %arg3[%c64, %c0_20] : memref<88x16xf32, #tpu.memory_space<vmem>>, vector<10x15xf32>
    %cst_21 = arith.constant dense<0.000000e+00> : vector<10x512xf32>
    %27 = tpu.matmul %26, %25, %cst_21 {dimension_numbers = #tpu.dot_dimension_numbers<[1], [0], [0], [1], [0, 0, 1, 1], [], []>} : vector<10x15xf32>, vector<15x512xf32>, vector<10x512xf32> -> vector<10x512xf32>
    %c48_22 = arith.constant 48 : index
    %c0_23 = arith.constant 0 : index
    %28 = vector.load %arg4[%c48_22, %c0_23] : memref<72x1xf32, #tpu.memory_space<vmem>>, vector<10x1xf32>
    %29 = vector.broadcast %28 : vector<10x1xf32> to vector<10x512xf32>
    %30 = arith.addf %27, %29 : vector<10x512xf32>
    %cst_24 = arith.constant 0.000000e+00 : f32
    %31 = vector.broadcast %cst_24 : f32 to vector<10x512xf32>
    %32 = arith.maximumf %30, %31 : vector<10x512xf32>
    %c80 = arith.constant 80 : index
    %c0_25 = arith.constant 0 : index
    %33 = vector.load %arg3[%c80, %c0_25] : memref<88x16xf32, #tpu.memory_space<vmem>>, vector<2x10xf32>
    %cst_26 = arith.constant dense<0.000000e+00> : vector<2x512xf32>
    %34 = tpu.matmul %33, %32, %cst_26 {dimension_numbers = #tpu.dot_dimension_numbers<[1], [0], [0], [1], [0, 0, 1, 1], [], []>} : vector<2x10xf32>, vector<10x512xf32>, vector<2x512xf32> -> vector<2x512xf32>
    %c64_27 = arith.constant 64 : index
    %c0_28 = arith.constant 0 : index
    %35 = vector.load %arg4[%c64_27, %c0_28] : memref<72x1xf32, #tpu.memory_space<vmem>>, vector<2x1xf32>
    %36 = vector.broadcast %35 : vector<2x1xf32> to vector<2x512xf32>
    %37 = arith.addf %34, %36 : vector<2x512xf32>
    %c0_29 = arith.constant 0 : index
    %c0_30 = arith.constant 0 : index
    %38 = vector.load %arg5[%c0_29, %c0_30] : memref<2x512xf32, #tpu.memory_space<vmem>>, vector<2x512xf32>
    tpu.vector_store %arg5[%c0_29, %c0_30], %37 {strides = array<i32>} : memref<2x512xf32, #tpu.memory_space<vmem>>, vector<2x512xf32>,
    return
  }
  func.func @transform_0(%arg0: i32) -> (i32, i32) {
    %c0_i32 = arith.constant 0 : i32
    %c0_i32_0 = arith.constant 0 : i32
    return %c0_i32, %arg0 : i32, i32
  }
  func.func @transform_1(%arg0: i32) -> (i32, i32) {
    %c0_i32 = arith.constant 0 : i32
    %c0_i32_0 = arith.constant 0 : i32
    return %c0_i32, %arg0 : i32, i32
  }
  func.func @transform_2(%arg0: i32) -> (i32, i32) {
    %c0_i32 = arith.constant 0 : i32
    %c0_i32_0 = arith.constant 0 : i32
    %c0_i32_1 = arith.constant 0 : i32
    return %c0_i32, %c0_i32_0 : i32, i32
  }
  func.func @transform_3(%arg0: i32) -> (i32, i32) {
    %c0_i32 = arith.constant 0 : i32
    %c0_i32_0 = arith.constant 0 : i32
    %c0_i32_1 = arith.constant 0 : i32
    return %c0_i32, %c0_i32_0 : i32, i32
  }
  func.func @transform_4(%arg0: i32) -> (i32, i32) {
    %c0_i32 = arith.constant 0 : i32
    %c0_i32_0 = arith.constant 0 : i32
    return %c0_i32, %arg0 : i32, i32
  }
}

</mosaic_0001>

<llo_original>
// kernel: tpu_custom_call.1
$region0: #{tpu_custom_call.1}
  #allocation0 [shape = 'u32[]', space=smem, size = 0x4, offset = 0x4, fixed_abs, tag = 'smem constant byte address 0x4 - core index']
  #allocation1 [shape = 'u32[72,128]{1,0:T(1,128)}', space=vmem, size = 0x9000, scoped, tag = 'internal scratch']
  %s0 = inlined_call_operand.vmem [shape: f32[5,1024], index: 0, kind: input, shape index: {}]
  %s1 = inlined_call_operand.vmem [shape: f32[5,1024], index: 1, kind: input, shape index: {}]
  %s2 = inlined_call_operand.vmem [shape: f32[88,16], index: 2, kind: input, shape index: {}]
  %s3 = inlined_call_operand.vmem [shape: f32[72,1], index: 3, kind: input, shape index: {}]
  %s4 = inlined_call_operand.hbm [shape: f32[2,1024], index: 4, kind: output, shape index: {}]
  %s5 = sld [smem:[#allocation0]]
  $region49: #{tpu_custom_call.1} parent=0
    _
  %s7 = ssub.s32 1, %s5
  %s8 = scalar_select 0, %s7, %s5
  $region1: #{tpu_custom_call.1} parent=0
    #allocation2 [shape = 'u8[8192]{0}', space=vmem, size = 0x2000, scoped, tag = 'output window, operand 0']
    #allocation3 [shape = 's32[2]{0}', space=sflag, size = 0x8, scoped, tag = 'scoped memory for tpu_custom_call.1']
    %9 = vsyncpa [#allocation3], 0
    %s10 = scalar_lea.sflag [#allocation3], 1
    %11 = vsyncpa %s10, 0
    loop: start=0, step=1, limit=4
    $region2: #{tpu_custom_call.1} parent=1 // loop_pre_header
      _
    $region3: #{tpu_custom_call.1} parent=1 // loop_header
      %s13 = sphi 0, %s17
      %p14 = scmp.ge.s32.totalorder %s13, 4
      %s23 = sphi 0, %s25
      %s26 = sphi 0, %s23
      %s27 = sphi 0, %s26
      %s43 = sphi 0, %s27
      %s49 = sphi 0, %s51
      %s52 = sphi 0, %s49
      %s53 = sphi 0, %s52
      %s69 = sphi 0, %s53
      %s73 = sphi 0, %s73
      %s75 = sphi 0, %s73
      %s76 = sphi 0, %s75
      %s90 = sphi 0, %s76
      %s94 = sphi 0, %s94
      %s96 = sphi 0, %s94
      %s97 = sphi 0, %s96
      %s111 = sphi 0, %s97
      %s117 = sphi 0, %s119
      %s120 = sphi 0, %s117
      %s121 = sphi 0, %s120
      %s137 = sphi 0, %s121
    $region4: #{tpu_custom_call.1} parent=1 // loop_header_branch
      %16 = sbr.rel (%p14) target = $region8
    $region5: #{tpu_custom_call.1} parent=1 // loop_body
      %s18 = ssub.s32 %s13, 1
      %s19 = ssub.s32 %s13, 2
      %s20 = sadd.s32 %s13, 1
      %s21 = ssub.s32 %s13, %s20
      %p22 = scmp.eq.s32.totalorder %s21, 0
      %s24 = sadd.s32 %s23, 1
      %s25 = scalar_select %p22, %s23, %s24
      %p28 = pneg %p22
      %p29 = scmp.eq.s32.totalorder %s13, 1
      %p30 = por %p28, %p29
      %p31 = scmp.ne.s32.totalorder %s23, %s26
      %p32 = scmp.eq.s32.totalorder %s13, 0
      %p33 = por %p31, %p32
      %p34 = scmp.ne.s32.totalorder %s23, %s26
      %p35 = scmp.eq.s32.totalorder %s18, 1
      %p36 = por %p34, %p35
      %p37 = scmp.ne.s32.totalorder %s26, %s27
      %p38 = scmp.eq.s32.totalorder %s18, 0
      %p39 = por %p37, %p38
      %p40 = scmp.ne.s32.totalorder %s26, %s27
      %p41 = scmp.eq.s32.totalorder %s19, 1
      %p42 = por %p40, %p41
      %p44 = scmp.ne.s32.totalorder %s27, %s43
      %p45 = scmp.eq.s32.totalorder %s19, 0
      %p46 = por %p44, %p45
      %s47 = ssub.s32 %s13, %s20
      %p48 = scmp.eq.s32.totalorder %s47, 0
      %s50 = sadd.s32 %s49, 1
      %s51 = scalar_select %p48, %s49, %s50
      %p54 = pneg %p48
      %p55 = scmp.eq.s32.totalorder %s13, 1
      %p56 = por %p54, %p55
      %p57 = scmp.ne.s32.totalorder %s49, %s52
      %p58 = scmp.eq.s32.totalorder %s13, 0
      %p59 = por %p57, %p58
      %p60 = scmp.ne.s32.totalorder %s49, %s52
      %p61 = scmp.eq.s32.totalorder %s18, 1
      %p62 = por %p60, %p61
      %p63 = scmp.ne.s32.totalorder %s52, %s53
      %p64 = scmp.eq.s32.totalorder %s18, 0
      %p65 = por %p63, %p64
      %p66 = scmp.ne.s32.totalorder %s52, %s53
      %p67 = scmp.eq.s32.totalorder %s19, 1
      %p68 = por %p66, %p67
      %p70 = scmp.ne.s32.totalorder %s53, %s69
      %p71 = scmp.eq.s32.totalorder %s19, 0
      %p72 = por %p70, %p71
      %s74 = sadd.s32 %s73, 1
      %p77 = scmp.eq.s32.totalorder %s13, 1
      %p78 = scmp.ne.s32.totalorder %s73, %s75
      %p79 = scmp.eq.s32.totalorder %s13, 0
      %p80 = por %p78, %p79
      %p81 = scmp.ne.s32.totalorder %s73, %s75
      %p82 = scmp.eq.s32.totalorder %s18, 1
      %p83 = por %p81, %p82
      %p84 = scmp.ne.s32.totalorder %s75, %s76
      %p85 = scmp.eq.s32.totalorder %s18, 0
      %p86 = por %p84, %p85
      %p87 = scmp.ne.s32.totalorder %s75, %s76
      %p88 = scmp.eq.s32.totalorder %s19, 1
      %p89 = por %p87, %p88
      %p91 = scmp.ne.s32.totalorder %s76, %s90
      %p92 = scmp.eq.s32.totalorder %s19, 0
      %p93 = por %p91, %p92
      %s95 = sadd.s32 %s94, 1
      %p98 = scmp.eq.s32.totalorder %s13, 1
      %p99 = scmp.ne.s32.totalorder %s94, %s96
      %p100 = scmp.eq.s32.totalorder %s13, 0
      %p101 = por %p99, %p100
      %p102 = scmp.ne.s32.totalorder %s94, %s96
      %p103 = scmp.eq.s32.totalorder %s18, 1
      %p104 = por %p102, %p103
      %p105 = scmp.ne.s32.totalorder %s96, %s97
      %p106 = scmp.eq.s32.totalorder %s18, 0
      %p107 = por %p105, %p106
      %p108 = scmp.ne.s32.totalorder %s96, %s97
      %p109 = scmp.eq.s32.totalorder %s19, 1
      %p110 = por %p108, %p109
      %p112 = scmp.ne.s32.totalorder %s97, %s111
      %p113 = scmp.eq.s32.totalorder %s19, 0
      %p114 = por %p112, %p113
      %s115 = ssub.s32 %s13, %s20
      %p116 = scmp.eq.s32.totalorder %s115, 0
      %s118 = sadd.s32 %s117, 1
      %s119 = scalar_select %p116, %s117, %s118
      %p122 = pneg %p116
      %p123 = scmp.eq.s32.totalorder %s13, 1
      %p124 = por %p122, %p123
      %p125 = scmp.ne.s32.totalorder %s117, %s120
      %p126 = scmp.eq.s32.totalorder %s13, 0
      %p127 = por %p125, %p126
      %p128 = scmp.ne.s32.totalorder %s117, %s120
      %p129 = scmp.eq.s32.totalorder %s18, 1
      %p130 = por %p128, %p129
      %p131 = scmp.ne.s32.totalorder %s120, %s121
      %p132 = scmp.eq.s32.totalorder %s18, 0
      %p133 = por %p131, %p132
      %p134 = scmp.ne.s32.totalorder %s120, %s121
      %p135 = scmp.eq.s32.totalorder %s19, 1
      %p136 = por %p134, %p135
      %p138 = scmp.ne.s32.totalorder %s121, %s137
      %p139 = scmp.eq.s32.totalorder %s19, 0
      %p140 = por %p138, %p139
      %p141 = scmp.le.s32.totalorder 1, %s13
      %p142 = scmp.lt.s32.totalorder %s13, 3
      %p143 = pnand %p141, %p142
      %p144 = pneg %p143
      // Predicated region
      $region9: #{tpu_custom_call.1} parent=5 // pred_check
        _
      $region10: #{tpu_custom_call.1} parent=5 // pred_check_branch
        %146 = sbr.rel (%p143) target = $region12
      $region11: #{tpu_custom_call.1} parent=5 // pred_region
        %s147 = ssub.s32 %s13, 1
        // Predicated region
        $region13: #{tpu_custom_call.1} parent=11 // pred_check
          %p148 = pneg %p86
        $region14: #{tpu_custom_call.1} parent=11 // pred_check_branch
          %150 = sbr.rel (%p148) target = $region16
        $region15: #{tpu_custom_call.1} parent=11 // pred_region
          _
        $region16: #{tpu_custom_call.1} parent=11 // pred_fallthru
          _
        // Predicated region
        $region17: #{tpu_custom_call.1} parent=11 // pred_check
          %p151 = pneg %p107
        $region18: #{tpu_custom_call.1} parent=11 // pred_check_branch
          %153 = sbr.rel (%p151) target = $region20
        $region19: #{tpu_custom_call.1} parent=11 // pred_region
          _
        $region20: #{tpu_custom_call.1} parent=11 // pred_fallthru
          _
      $region12: #{tpu_custom_call.1} parent=5 // pred_fallthru
        _
      %p154 = scmp.lt.s32.totalorder %s13, 2
      // Predicated region
      $region21: #{tpu_custom_call.1} parent=5 // pred_check
        %p155 = pneg %p154
      $region22: #{tpu_custom_call.1} parent=5 // pred_check_branch
        %157 = sbr.rel (%p155) target = $region24
      $region23: #{tpu_custom_call.1} parent=5 // pred_region
        // Predicated region
        $region25: #{tpu_custom_call.1} parent=23 // pred_check
          %p158 = pneg %p33
        $region26: #{tpu_custom_call.1} parent=23 // pred_check_branch
          %160 = sbr.rel (%p158) target = $region28
        $region27: #{tpu_custom_call.1} parent=23 // pred_region
          %s161 = smul.u32 4, %s13
          %p162 = scmp.lt.s32.totalorder %s161, 7
          %s163 = scalar_select %p162, %s161, 7
          %s164 = smul.addr %s163, 8
          %s165 = scalar_lea.vmem %s0, %s164
          %s166 = smul.u32 4, %s13
        $region28: #{tpu_custom_call.1} parent=23 // pred_fallthru
          _
        // Predicated region
        $region29: #{tpu_custom_call.1} parent=23 // pred_check
          %p167 = pneg %p59
        $region30: #{tpu_custom_call.1} parent=23 // pred_check_branch
          %169 = sbr.rel (%p167) target = $region32
        $region31: #{tpu_custom_call.1} parent=23 // pred_region
          %s170 = smul.u32 4, %s13
          %p171 = scmp.lt.s32.totalorder %s170, 7
          %s172 = scalar_select %p171, %s170, 7
          %s173 = smul.addr %s172, 8
          %s174 = scalar_lea.vmem %s1, %s173
          %s175 = smul.u32 4, %s13
        $region32: #{tpu_custom_call.1} parent=23 // pred_fallthru
          _
      $region24: #{tpu_custom_call.1} parent=5 // pred_fallthru
        _
      %p176 = scmp.le.s32.totalorder 1, %s13
      %p177 = scmp.lt.s32.totalorder %s13, 3
      %p178 = pnand %p176, %p177
      %p179 = pneg %p178
      // Predicated region
      $region33: #{tpu_custom_call.1} parent=5 // pred_check
        _
      $region34: #{tpu_custom_call.1} parent=5 // pred_check_branch
        %181 = sbr.rel (%p178) target = $region36
      $region35: #{tpu_custom_call.1} parent=5 // pred_region
        %s182 = ssub.s32 %s13, 1
        %s183 = smul.u32 4, %s18
        %p184 = scmp.lt.s32.totalorder %s183, 7
        %s185 = scalar_select %p184, %s183, 7
        %s186 = smul.addr %s185, 8
        %s187 = scalar_lea.vmem %s0, %s186
        %p188 = pneg %p39
        %p189 = pneg %p36
        %s190 = smul.u32 4, %s18
        %p191 = scmp.lt.s32.totalorder %s190, 7
        %s192 = scalar_select %p191, %s190, 7
        %s193 = smul.addr %s192, 8
        %s194 = scalar_lea.vmem %s1, %s193
        %p195 = pneg %p65
        %p196 = pneg %p62
        %p197 = pneg %p86
        %p198 = pneg %p83
        %p199 = pneg %p107
        %p200 = pneg %p104
        %p201 = pneg %p133
        %p202 = pneg %p130
        %s203 = sand.u32 %s120, 1
        %s204 = scalar_lea.sflag [#allocation3], %s203
        %s205 = sand.u32 %s120, 1
        %s206 = smul.addr %s205, 8
        %s207 = scalar_lea.vmem [#allocation2], %s206
        %s208 = smul.u32 4, %s18
        %p209 = scmp.lt.s32.totalorder %s208, 7
        %s210 = scalar_select %p209, %s208, 7
        %s211 = smul.addr %s210, 8
        %s212 = scalar_lea.vmem %s0, %s211
        %s213 = smul.u32 4, %s18
        %s214 = smul.u32 4, %s18
        %p215 = scmp.lt.s32.totalorder %s214, 7
        %s216 = scalar_select %p215, %s214, 7
        %s217 = smul.addr %s216, 8
        %s218 = scalar_lea.vmem %s1, %s217
        %s219 = smul.u32 4, %s18
        %s220 = smul.u32 4, %s18
        %v221 = vld [vmem:[%s212] sm:$0x1f]
        %v222 = vld [vmem:[%s212 + $0x8] sm:$0x1f]
        %v223 = vld [vmem:[%s212 + $0x10] sm:$0x1f]
        %v224 = vld [vmem:[%s212 + $0x18] sm:$0x1f]
        %v225 = vld [vmem:[%s218] sm:$0x1f]
        %v226 = vld [vmem:[%s218 + $0x8] sm:$0x1f]
        %v227 = vld [vmem:[%s218 + $0x10] sm:$0x1f]
        %v228 = vld [vmem:[%s218 + $0x18] sm:$0x1f]
        %v229 = vld [vmem:[%s2] sm:$0xff]
        %v230 = vld [vmem:[%s2 + $0x8] sm:$0x3]
        %v231 = vld [vmem:[%s3] sm:$0xff]
        %v232 = vld [vmem:[%s3 + $0x8] sm:$0x3]
        %234 = vset.pattern.permute.xlu0 0
        %235 = vperm.xlu0 %234, %v231
        %v236 = vpop.permute.xlu0 %235
        %239 = vset.pattern.permute.xlu0 0
        %240 = vperm.xlu0 %239, %v232
        %v241 = vpop.permute.xlu0 %240
        %vm243 = vcmask 39936
        %v245 = vsel %vm243, %v229, 0
        %v248 = vsel %vm243, %v230, 0
        %vm250 = vcmask 1044480
        %v252 = vsel %vm250, %v221, 0
        %v255 = vsel %vm250, %v222, 0
        %v258 = vsel %vm250, %v223, 0
        %v261 = vsel %vm250, %v224, 0
        %263 = vmatpush.msra.mxu0 0.0
        %264 = vmatpush.msra.mxu0 0.0
        %265 = vmatpush.msra.mxu0 0.0
        %266 = vmatpush.msra.mxu0 0.0
        %267 = vmatpush.msra.mxu0 0.0
        %268 = vmatpush.msra.mxu0 0.0
        %269 = vmatpush.msra.mxu0 0.0
        %270 = vmatpush.msra.mxu0 0.0
        %271 = vmatpush.msra.mxu0 0.0
        %272 = vmatpush.msra.mxu0 0.0
        %273 = vmatpush.msra.mxu0 0.0
        %274 = vmatpush.msra.mxu0 0.0
        %275 = vmatpush.msra.mxu0 0.0
        %276 = vmatpush.msra.mxu0 0.0
        %277 = vmatpush.msra.mxu0 0.0
        %278 = vmatpush.msra.mxu0 %v252
        %279 = vmatmul.f32.gmra.mxu0 %v245
        %v280 = vpop.f32.mrf.mxu0
        %v281 = vadd.f32 %v236, %v280
        %282 = vmatmul.f32.gmra.mxu0 %v248
        %v283 = vpop.f32.mrf.mxu0
        %v284 = vadd.f32 %v241, %v283
        %285 = vdwg.mxu0
        %286 = vmatpush.msra.mxu0 0.0
        %287 = vmatpush.msra.mxu0 0.0
        %288 = vmatpush.msra.mxu0 0.0
        %289 = vmatpush.msra.mxu0 0.0
        %290 = vmatpush.msra.mxu0 0.0
        %291 = vmatpush.msra.mxu0 0.0
        %292 = vmatpush.msra.mxu0 0.0
        %293 = vmatpush.msra.mxu0 0.0
        %294 = vmatpush.msra.mxu0 0.0
        %295 = vmatpush.msra.mxu0 0.0
        %296 = vmatpush.msra.mxu0 0.0
        %297 = vmatpush.msra.mxu0 0.0
        %298 = vmatpush.msra.mxu0 0.0
        %299 = vmatpush.msra.mxu0 0.0
        %300 = vmatpush.msra.mxu0 0.0
        %301 = vmatpush.msra.mxu0 %v255
        %302 = vmatmul.f32.gmra.mxu0 %v245
        %v303 = vpop.f32.mrf.mxu0
        %v304 = vadd.f32 %v236, %v303
        %305 = vmatmul.f32.gmra.mxu0 %v248
        %v306 = vpop.f32.mrf.mxu0
        %v307 = vadd.f32 %v241, %v306
        %308 = vdwg.mxu0
        %309 = vmatpush.msra.mxu0 0.0
        %310 = vmatpush.msra.mxu0 0.0
        %311 = vmatpush.msra.mxu0 0.0
        %312 = vmatpush.msra.mxu0 0.0
        %313 = vmatpush.msra.mxu0 0.0
        %314 = vmatpush.msra.mxu0 0.0
        %315 = vmatpush.msra.mxu0 0.0
        %316 = vmatpush.msra.mxu0 0.0
        %317 = vmatpush.msra.mxu0 0.0
        %318 = vmatpush.msra.mxu0 0.0
        %319 = vmatpush.msra.mxu0 0.0
        %320 = vmatpush.msra.mxu0 0.0
        %321 = vmatpush.msra.mxu0 0.0
        %322 = vmatpush.msra.mxu0 0.0
        %323 = vmatpush.msra.mxu0 0.0
        %324 = vmatpush.msra.mxu0 %v258
        %325 = vmatmul.f32.gmra.mxu0 %v245
        %v326 = vpop.f32.mrf.mxu0
        %v327 = vadd.f32 %v236, %v326
        %328 = vmatmul.f32.gmra.mxu0 %v248
        %v329 = vpop.f32.mrf.mxu0
        %v330 = vadd.f32 %v241, %v329
        %331 = vdwg.mxu0
        %332 = vmatpush.msra.mxu0 0.0
        %333 = vmatpush.msra.mxu0 0.0
        %334 = vmatpush.msra.mxu0 0.0
        %335 = vmatpush.msra.mxu0 0.0
        %336 = vmatpush.msra.mxu0 0.0
        %337 = vmatpush.msra.mxu0 0.0
        %338 = vmatpush.msra.mxu0 0.0
        %339 = vmatpush.msra.mxu0 0.0
        %340 = vmatpush.msra.mxu0 0.0
        %341 = vmatpush.msra.mxu0 0.0
        %342 = vmatpush.msra.mxu0 0.0
        %343 = vmatpush.msra.mxu0 0.0
        %344 = vmatpush.msra.mxu0 0.0
        %345 = vmatpush.msra.mxu0 0.0
        %346 = vmatpush.msra.mxu0 0.0
        %347 = vmatpush.msra.mxu0 %v261
        %348 = vmatmul.f32.gmra.mxu0 %v245
        %v349 = vpop.f32.mrf.mxu0
        %v350 = vadd.f32 %v236, %v349
        %351 = vmatmul.f32.gmra.mxu0 %v248
        %v352 = vpop.f32.mrf.mxu0
        %v353 = vadd.f32 %v241, %v352
        %354 = vdwg.mxu0
        %v355 = vld [vmem:[%s2 + $0x10] sm:$0xff]
        %v356 = vld [vmem:[%s2 + $0x18] sm:$0x3]
        %v357 = vld [vmem:[%s3 + $0x10] sm:$0xff]
        %v358 = vld [vmem:[%s3 + $0x18] sm:$0x3]
        %360 = vset.pattern.permute.xlu0 0
        %361 = vperm.xlu0 %360, %v357
        %v362 = vpop.permute.xlu0 %361
        %365 = vset.pattern.permute.xlu0 0
        %366 = vperm.xlu0 %365, %v358
        %v367 = vpop.permute.xlu0 %366
        %v370 = vsel %vm243, %v355, 0
        %v373 = vsel %vm243, %v356, 0
        %v376 = vsel %vm250, %v225, 0
        %v379 = vsel %vm250, %v226, 0
        %v382 = vsel %vm250, %v227, 0
        %v385 = vsel %vm250, %v228, 0
        %387 = vmatpush.msra.mxu0 0.0
        %388 = vmatpush.msra.mxu0 0.0
        %389 = vmatpush.msra.mxu0 0.0
        %390 = vmatpush.msra.mxu0 0.0
        %391 = vmatpush.msra.mxu0 0.0
        %392 = vmatpush.msra.mxu0 0.0
        %393 = vmatpush.msra.mxu0 0.0
        %394 = vmatpush.msra.mxu0 0.0
        %395 = vmatpush.msra.mxu0 0.0
        %396 = vmatpush.msra.mxu0 0.0
        %397 = vmatpush.msra.mxu0 0.0
        %398 = vmatpush.msra.mxu0 0.0
        %399 = vmatpush.msra.mxu0 0.0
        %400 = vmatpush.msra.mxu0 0.0
        %401 = vmatpush.msra.mxu0 0.0
        %402 = vmatpush.msra.mxu0 %v376
        %403 = vmatmul.f32.gmra.mxu0 %v370
        %v404 = vpop.f32.mrf.mxu0
        %v405 = vadd.f32 %v362, %v404
        %406 = vmatmul.f32.gmra.mxu0 %v373
        %v407 = vpop.f32.mrf.mxu0
        %v408 = vadd.f32 %v367, %v407
        %409 = vdwg.mxu0
        %410 = vmatpush.msra.mxu0 0.0
        %411 = vmatpush.msra.mxu0 0.0
        %412 = vmatpush.msra.mxu0 0.0
        %413 = vmatpush.msra.mxu0 0.0
        %414 = vmatpush.msra.mxu0 0.0
        %415 = vmatpush.msra.mxu0 0.0
        %416 = vmatpush.msra.mxu0 0.0
        %417 = vmatpush.msra.mxu0 0.0
        %418 = vmatpush.msra.mxu0 0.0
        %419 = vmatpush.msra.mxu0 0.0
        %420 = vmatpush.msra.mxu0 0.0
        %421 = vmatpush.msra.mxu0 0.0
        %422 = vmatpush.msra.mxu0 0.0
        %423 = vmatpush.msra.mxu0 0.0
        %424 = vmatpush.msra.mxu0 0.0
        %425 = vmatpush.msra.mxu0 %v379
        %426 = vmatmul.f32.gmra.mxu0 %v370
        %v427 = vpop.f32.mrf.mxu0
        %v428 = vadd.f32 %v362, %v427
        %429 = vmatmul.f32.gmra.mxu0 %v373
        %v430 = vpop.f32.mrf.mxu0
        %v431 = vadd.f32 %v367, %v430
        %432 = vdwg.mxu0
        %433 = vmatpush.msra.mxu0 0.0
        %434 = vmatpush.msra.mxu0 0.0
        %435 = vmatpush.msra.mxu0 0.0
        %436 = vmatpush.msra.mxu0 0.0
        %437 = vmatpush.msra.mxu0 0.0
        %438 = vmatpush.msra.mxu0 0.0
        %439 = vmatpush.msra.mxu0 0.0
        %440 = vmatpush.msra.mxu0 0.0
        %441 = vmatpush.msra.mxu0 0.0
        %442 = vmatpush.msra.mxu0 0.0
        %443 = vmatpush.msra.mxu0 0.0
        %444 = vmatpush.msra.mxu0 0.0
        %445 = vmatpush.msra.mxu0 0.0
        %446 = vmatpush.msra.mxu0 0.0
        %447 = vmatpush.msra.mxu0 0.0
        %448 = vmatpush.msra.mxu0 %v382
        %449 = vmatmul.f32.gmra.mxu0 %v370
        %v450 = vpop.f32.mrf.mxu0
        %v451 = vadd.f32 %v362, %v450
        %452 = vmatmul.f32.gmra.mxu0 %v373
        %v453 = vpop.f32.mrf.mxu0
        %v454 = vadd.f32 %v367, %v453
        %455 = vdwg.mxu0
        %456 = vmatpush.msra.mxu0 0.0
        %457 = vmatpush.msra.mxu0 0.0
        %458 = vmatpush.msra.mxu0 0.0
        %459 = vmatpush.msra.mxu0 0.0
        %460 = vmatpush.msra.mxu0 0.0
        %461 = vmatpush.msra.mxu0 0.0
        %462 = vmatpush.msra.mxu0 0.0
        %463 = vmatpush.msra.mxu0 0.0
        %464 = vmatpush.msra.mxu0 0.0
        %465 = vmatpush.msra.mxu0 0.0
        %466 = vmatpush.msra.mxu0 0.0
        %467 = vmatpush.msra.mxu0 0.0
        %468 = vmatpush.msra.mxu0 0.0
        %469 = vmatpush.msra.mxu0 0.0
        %470 = vmatpush.msra.mxu0 0.0
        %471 = vmatpush.msra.mxu0 %v385
        %472 = vmatmul.f32.gmra.mxu0 %v370
        %v473 = vpop.f32.mrf.mxu0
        %v474 = vadd.f32 %v362, %v473
        %475 = vmatmul.f32.gmra.mxu0 %v373
        %v476 = vpop.f32.mrf.mxu0
        %v477 = vadd.f32 %v367, %v476
        %478 = vdwg.mxu0
        %v479 = vmax.f32 %v281, 0.0
        %v480 = vmax.f32 %v304, 0.0
        %v481 = vmax.f32 %v327, 0.0
        %v482 = vmax.f32 %v350, 0.0
        %v483 = vmax.f32 %v284, 0.0
        %v484 = vmax.f32 %v307, 0.0
        %v485 = vmax.f32 %v330, 0.0
        %v486 = vmax.f32 %v353, 0.0
        %v487 = vmax.f32 %v405, 0.0
        %v488 = vmax.f32 %v428, 0.0
        %v489 = vmax.f32 %v451, 0.0
        %v490 = vmax.f32 %v474, 0.0
        %v491 = vmax.f32 %v408, 0.0
        %v492 = vmax.f32 %v431, 0.0
        %v493 = vmax.f32 %v454, 0.0
        %v494 = vmax.f32 %v477, 0.0
        %v495 = vld [vmem:[%s2 + $0x20] sm:$0xff]
        %v496 = vld [vmem:[%s2 + $0x28] sm:$0x7f]
        %v497 = vld [vmem:[%s2 + $0x30] sm:$0xff]
        %v498 = vld [vmem:[%s2 + $0x38] sm:$0x7f]
        %vm499 = vcmask 80896
        %v501 = vsel %vm499, %v497, 0
        %v504 = vsel %vm499, %v498, 0
        %vm506 = vcmask 1041408
        %v508 = vsel %vm506, %v491, 0
        %v511 = vsel %vm506, %v492, 0
        %v514 = vsel %vm506, %v493, 0
        %v517 = vsel %vm506, %v494, 0
        %519 = vmatpush.msra.mxu0 0.0
        %520 = vmatpush.msra.mxu0 0.0
        %521 = vmatpush.msra.mxu0 0.0
        %522 = vmatpush.msra.mxu0 0.0
        %523 = vmatpush.msra.mxu0 0.0
        %524 = vmatpush.msra.mxu0 0.0
        %525 = vmatpush.msra.mxu0 0.0
        %526 = vmatpush.msra.mxu0 0.0
        %527 = vmatpush.msra.mxu0 0.0
        %528 = vmatpush.msra.mxu0 0.0
        %529 = vmatpush.msra.mxu0 0.0
        %530 = vmatpush.msra.mxu0 0.0
        %531 = vmatpush.msra.mxu0 0.0
        %532 = vmatpush.msra.mxu0 0.0
        %533 = vmatpush.msra.mxu0 %v508
        %534 = vmatpush.msra.mxu0 %v487
        %535 = vmatmul.f32.gmra.mxu0 %v501
        %v536 = vpop.f32.mrf.mxu0
        %v537 = vadd.f32 0.0, %v536
        %538 = vmatmul.f32.gmra.mxu0 %v504
        %v539 = vpop.f32.mrf.mxu0
        %v540 = vadd.f32 0.0, %v539
        %541 = vdwg.mxu0
        %542 = vmatpush.msra.mxu0 0.0
        %543 = vmatpush.msra.mxu0 0.0
        %544 = vmatpush.msra.mxu0 0.0
        %545 = vmatpush.msra.mxu0 0.0
        %546 = vmatpush.msra.mxu0 0.0
        %547 = vmatpush.msra.mxu0 0.0
        %548 = vmatpush.msra.mxu0 0.0
        %549 = vmatpush.msra.mxu0 0.0
        %550 = vmatpush.msra.mxu0 0.0
        %551 = vmatpush.msra.mxu0 0.0
        %552 = vmatpush.msra.mxu0 0.0
        %553 = vmatpush.msra.mxu0 0.0
        %554 = vmatpush.msra.mxu0 0.0
        %555 = vmatpush.msra.mxu0 0.0
        %556 = vmatpush.msra.mxu0 %v511
        %557 = vmatpush.msra.mxu0 %v488
        %558 = vmatmul.f32.gmra.mxu0 %v501
        %v559 = vpop.f32.mrf.mxu0
        %v560 = vadd.f32 0.0, %v559
        %561 = vmatmul.f32.gmra.mxu0 %v504
        %v562 = vpop.f32.mrf.mxu0
        %v563 = vadd.f32 0.0, %v562
        %564 = vdwg.mxu0
        %565 = vmatpush.msra.mxu0 0.0
        %566 = vmatpush.msra.mxu0 0.0
        %567 = vmatpush.msra.mxu0 0.0
        %568 = vmatpush.msra.mxu0 0.0
        %569 = vmatpush.msra.mxu0 0.0
        %570 = vmatpush.msra.mxu0 0.0
        %571 = vmatpush.msra.mxu0 0.0
        %572 = vmatpush.msra.mxu0 0.0
        %573 = vmatpush.msra.mxu0 0.0
        %574 = vmatpush.msra.mxu0 0.0
        %575 = vmatpush.msra.mxu0 0.0
        %576 = vmatpush.msra.mxu0 0.0
        %577 = vmatpush.msra.mxu0 0.0
        %578 = vmatpush.msra.mxu0 0.0
        %579 = vmatpush.msra.mxu0 %v514
        %580 = vmatpush.msra.mxu0 %v489
        %581 = vmatmul.f32.gmra.mxu0 %v501
        %v582 = vpop.f32.mrf.mxu0
        %v583 = vadd.f32 0.0, %v582
        %584 = vmatmul.f32.gmra.mxu0 %v504
        %v585 = vpop.f32.mrf.mxu0
        %v586 = vadd.f32 0.0, %v585
        %587 = vdwg.mxu0
        %588 = vmatpush.msra.mxu0 0.0
        %589 = vmatpush.msra.mxu0 0.0
        %590 = vmatpush.msra.mxu0 0.0
        %591 = vmatpush.msra.mxu0 0.0
        %592 = vmatpush.msra.mxu0 0.0
        %593 = vmatpush.msra.mxu0 0.0
        %594 = vmatpush.msra.mxu0 0.0
        %595 = vmatpush.msra.mxu0 0.0
        %596 = vmatpush.msra.mxu0 0.0
        %597 = vmatpush.msra.mxu0 0.0
        %598 = vmatpush.msra.mxu0 0.0
        %599 = vmatpush.msra.mxu0 0.0
        %600 = vmatpush.msra.mxu0 0.0
        %601 = vmatpush.msra.mxu0 0.0
        %602 = vmatpush.msra.mxu0 %v517
        %603 = vmatpush.msra.mxu0 %v490
        %604 = vmatmul.f32.gmra.mxu0 %v501
        %v605 = vpop.f32.mrf.mxu0
        %v606 = vadd.f32 0.0, %v605
        %607 = vmatmul.f32.gmra.mxu0 %v504
        %v608 = vpop.f32.mrf.mxu0
        %v609 = vadd.f32 0.0, %v608
        %610 = vdwg.mxu0
        %v612 = vsel %vm499, %v495, 0
        %v615 = vsel %vm499, %v496, 0
        %v618 = vsel %vm506, %v483, 0
        %v621 = vsel %vm506, %v484, 0
        %v624 = vsel %vm506, %v485, 0
        %v627 = vsel %vm506, %v486, 0
        %629 = vmatpush.msra.mxu0 0.0
        %630 = vmatpush.msra.mxu0 0.0
        %631 = vmatpush.msra.mxu0 0.0
        %632 = vmatpush.msra.mxu0 0.0
        %633 = vmatpush.msra.mxu0 0.0
        %634 = vmatpush.msra.mxu0 0.0
        %635 = vmatpush.msra.mxu0 0.0
        %636 = vmatpush.msra.mxu0 0.0
        %637 = vmatpush.msra.mxu0 0.0
        %638 = vmatpush.msra.mxu0 0.0
        %639 = vmatpush.msra.mxu0 0.0
        %640 = vmatpush.msra.mxu0 0.0
        %641 = vmatpush.msra.mxu0 0.0
        %642 = vmatpush.msra.mxu0 0.0
        %643 = vmatpush.msra.mxu0 %v618
        %644 = vmatpush.msra.mxu0 %v479
        %645 = vmatmul.f32.gmra.mxu0 %v612
        %v646 = vpop.f32.mrf.mxu0
        %v647 = vadd.f32 %v537, %v646
        %648 = vmatmul.f32.gmra.mxu0 %v615
        %v649 = vpop.f32.mrf.mxu0
        %v650 = vadd.f32 %v540, %v649
        %651 = vdwg.mxu0
        %652 = vmatpush.msra.mxu0 0.0
        %653 = vmatpush.msra.mxu0 0.0
        %654 = vmatpush.msra.mxu0 0.0
        %655 = vmatpush.msra.mxu0 0.0
        %656 = vmatpush.msra.mxu0 0.0
        %657 = vmatpush.msra.mxu0 0.0
        %658 = vmatpush.msra.mxu0 0.0
        %659 = vmatpush.msra.mxu0 0.0
        %660 = vmatpush.msra.mxu0 0.0
        %661 = vmatpush.msra.mxu0 0.0
        %662 = vmatpush.msra.mxu0 0.0
        %663 = vmatpush.msra.mxu0 0.0
        %664 = vmatpush.msra.mxu0 0.0
        %665 = vmatpush.msra.mxu0 0.0
        %666 = vmatpush.msra.mxu0 %v621
        %667 = vmatpush.msra.mxu0 %v480
        %668 = vmatmul.f32.gmra.mxu0 %v612
        %v669 = vpop.f32.mrf.mxu0
        %v670 = vadd.f32 %v560, %v669
        %671 = vmatmul.f32.gmra.mxu0 %v615
        %v672 = vpop.f32.mrf.mxu0
        %v673 = vadd.f32 %v563, %v672
        %674 = vdwg.mxu0
        %675 = vmatpush.msra.mxu0 0.0
        %676 = vmatpush.msra.mxu0 0.0
        %677 = vmatpush.msra.mxu0 0.0
        %678 = vmatpush.msra.mxu0 0.0
        %679 = vmatpush.msra.mxu0 0.0
        %680 = vmatpush.msra.mxu0 0.0
        %681 = vmatpush.msra.mxu0 0.0
        %682 = vmatpush.msra.mxu0 0.0
        %683 = vmatpush.msra.mxu0 0.0
        %684 = vmatpush.msra.mxu0 0.0
        %685 = vmatpush.msra.mxu0 0.0
        %686 = vmatpush.msra.mxu0 0.0
        %687 = vmatpush.msra.mxu0 0.0
        %688 = vmatpush.msra.mxu0 0.0
        %689 = vmatpush.msra.mxu0 %v624
        %690 = vmatpush.msra.mxu0 %v481
        %691 = vmatmul.f32.gmra.mxu0 %v612
        %v692 = vpop.f32.mrf.mxu0
        %v693 = vadd.f32 %v583, %v692
        %694 = vmatmul.f32.gmra.mxu0 %v615
        %v695 = vpop.f32.mrf.mxu0
        %v696 = vadd.f32 %v586, %v695
        %697 = vdwg.mxu0
        %698 = vmatpush.msra.mxu0 0.0
        %699 = vmatpush.msra.mxu0 0.0
        %700 = vmatpush.msra.mxu0 0.0
        %701 = vmatpush.msra.mxu0 0.0
        %702 = vmatpush.msra.mxu0 0.0
        %703 = vmatpush.msra.mxu0 0.0
        %704 = vmatpush.msra.mxu0 0.0
        %705 = vmatpush.msra.mxu0 0.0
        %706 = vmatpush.msra.mxu0 0.0
        %707 = vmatpush.msra.mxu0 0.0
        %708 = vmatpush.msra.mxu0 0.0
        %709 = vmatpush.msra.mxu0 0.0
        %710 = vmatpush.msra.mxu0 0.0
        %711 = vmatpush.msra.mxu0 0.0
        %712 = vmatpush.msra.mxu0 %v627
        %713 = vmatpush.msra.mxu0 %v482
        %714 = vmatmul.f32.gmra.mxu0 %v612
        %v715 = vpop.f32.mrf.mxu0
        %v716 = vadd.f32 %v606, %v715
        %717 = vmatmul.f32.gmra.mxu0 %v615
        %v718 = vpop.f32.mrf.mxu0
        %v719 = vadd.f32 %v609, %v718
        %720 = vdwg.mxu0
        %v721 = vld [vmem:[%s3 + $0x20] sm:$0xff]
        %v722 = vld [vmem:[%s3 + $0x28] sm:$0x7f]
        %724 = vset.pattern.permute.xlu0 0
        %725 = vperm.xlu0 %724, %v721
        %v726 = vpop.permute.xlu0 %725
        %729 = vset.pattern.permute.xlu0 0
        %730 = vperm.xlu0 %729, %v722
        %v731 = vpop.permute.xlu0 %730
        %v733 = vadd.f32 %v647, %v726
        %v734 = vadd.f32 %v670, %v726
        %v735 = vadd.f32 %v693, %v726
        %v736 = vadd.f32 %v716, %v726
        %v737 = vadd.f32 %v650, %v731
        %v738 = vadd.f32 %v673, %v731
        %v739 = vadd.f32 %v696, %v731
        %v740 = vadd.f32 %v719, %v731
        %v741 = vmax.f32 %v733, 0.0
        %v742 = vmax.f32 %v734, 0.0
        %v743 = vmax.f32 %v735, 0.0
        %v744 = vmax.f32 %v736, 0.0
        %v745 = vmax.f32 %v737, 0.0
        %v746 = vmax.f32 %v738, 0.0
        %v747 = vmax.f32 %v739, 0.0
        %v748 = vmax.f32 %v740, 0.0
        %v749 = vld [vmem:[%s2 + $0x40] sm:$0xff]
        %v750 = vld [vmem:[%s2 + $0x48] sm:$0x3]
        %v751 = vld [vmem:[%s3 + $0x30] sm:$0xff]
        %v752 = vld [vmem:[%s3 + $0x38] sm:$0x3]
        %754 = vset.pattern.permute.xlu0 0
        %755 = vperm.xlu0 %754, %v751
        %v756 = vpop.permute.xlu0 %755
        %759 = vset.pattern.permute.xlu0 0
        %760 = vperm.xlu0 %759, %v752
        %v761 = vpop.permute.xlu0 %760
        %vm763 = vcmask 121856
        %v765 = vsel %vm763, %v749, 0
        %v768 = vsel %vm763, %v750, 0
        %vm770 = vcmask 1046528
        %v772 = vsel %vm770, %v745, 0
        %v775 = vsel %vm770, %v746, 0
        %v778 = vsel %vm770, %v747, 0
        %v781 = vsel %vm770, %v748, 0
        %783 = vmatpush.msra.mxu0 0.0
        %784 = vmatpush.msra.mxu0 0.0
        %785 = vmatpush.msra.mxu0 0.0
        %786 = vmatpush.msra.mxu0 0.0
        %787 = vmatpush.msra.mxu0 0.0
        %788 = vmatpush.msra.mxu0 0.0
        %789 = vmatpush.msra.mxu0 0.0
        %790 = vmatpush.msra.mxu0 0.0
        %791 = vmatpush.msra.mxu0 0.0
        %792 = vmatpush.msra.mxu0 0.0
        %793 = vmatpush.msra.mxu0 0.0
        %794 = vmatpush.msra.mxu0 0.0
        %795 = vmatpush.msra.mxu0 0.0
        %796 = vmatpush.msra.mxu0 0.0
        %797 = vmatpush.msra.mxu0 %v772
        %798 = vmatpush.msra.mxu0 %v741
        %799 = vmatmul.f32.gmra.mxu0 %v765
        %v800 = vpop.f32.mrf.mxu0
        %v801 = vadd.f32 %v756, %v800
        %802 = vmatmul.f32.gmra.mxu0 %v768
        %v803 = vpop.f32.mrf.mxu0
        %v804 = vadd.f32 %v761, %v803
        %805 = vdwg.mxu0
        %806 = vmatpush.msra.mxu0 0.0
        %807 = vmatpush.msra.mxu0 0.0
        %808 = vmatpush.msra.mxu0 0.0
        %809 = vmatpush.msra.mxu0 0.0
        %810 = vmatpush.msra.mxu0 0.0
        %811 = vmatpush.msra.mxu0 0.0
        %812 = vmatpush.msra.mxu0 0.0
        %813 = vmatpush.msra.mxu0 0.0
        %814 = vmatpush.msra.mxu0 0.0
        %815 = vmatpush.msra.mxu0 0.0
        %816 = vmatpush.msra.mxu0 0.0
        %817 = vmatpush.msra.mxu0 0.0
        %818 = vmatpush.msra.mxu0 0.0
        %819 = vmatpush.msra.mxu0 0.0
        %820 = vmatpush.msra.mxu0 %v775
        %821 = vmatpush.msra.mxu0 %v742
        %822 = vmatmul.f32.gmra.mxu0 %v765
        %v823 = vpop.f32.mrf.mxu0
        %v824 = vadd.f32 %v756, %v823
        %825 = vmatmul.f32.gmra.mxu0 %v768
        %v826 = vpop.f32.mrf.mxu0
        %v827 = vadd.f32 %v761, %v826
        %828 = vdwg.mxu0
        %829 = vmatpush.msra.mxu0 0.0
        %830 = vmatpush.msra.mxu0 0.0
        %831 = vmatpush.msra.mxu0 0.0
        %832 = vmatpush.msra.mxu0 0.0
        %833 = vmatpush.msra.mxu0 0.0
        %834 = vmatpush.msra.mxu0 0.0
        %835 = vmatpush.msra.mxu0 0.0
        %836 = vmatpush.msra.mxu0 0.0
        %837 = vmatpush.msra.mxu0 0.0
        %838 = vmatpush.msra.mxu0 0.0
        %839 = vmatpush.msra.mxu0 0.0
        %840 = vmatpush.msra.mxu0 0.0
        %841 = vmatpush.msra.mxu0 0.0
        %842 = vmatpush.msra.mxu0 0.0
        %843 = vmatpush.msra.mxu0 %v778
        %844 = vmatpush.msra.mxu0 %v743
        %845 = vmatmul.f32.gmra.mxu0 %v765
        %v846 = vpop.f32.mrf.mxu0
        %v847 = vadd.f32 %v756, %v846
        %848 = vmatmul.f32.gmra.mxu0 %v768
        %v849 = vpop.f32.mrf.mxu0
        %v850 = vadd.f32 %v761, %v849
        %851 = vdwg.mxu0
        %852 = vmatpush.msra.mxu0 0.0
        %853 = vmatpush.msra.mxu0 0.0
        %854 = vmatpush.msra.mxu0 0.0
        %855 = vmatpush.msra.mxu0 0.0
        %856 = vmatpush.msra.mxu0 0.0
        %857 = vmatpush.msra.mxu0 0.0
        %858 = vmatpush.msra.mxu0 0.0
        %859 = vmatpush.msra.mxu0 0.0
        %860 = vmatpush.msra.mxu0 0.0
        %861 = vmatpush.msra.mxu0 0.0
        %862 = vmatpush.msra.mxu0 0.0
        %863 = vmatpush.msra.mxu0 0.0
        %864 = vmatpush.msra.mxu0 0.0
        %865 = vmatpush.msra.mxu0 0.0
        %866 = vmatpush.msra.mxu0 %v781
        %867 = vmatpush.msra.mxu0 %v744
        %868 = vmatmul.f32.gmra.mxu0 %v765
        %v869 = vpop.f32.mrf.mxu0
        %v870 = vadd.f32 %v756, %v869
        %871 = vmatmul.f32.gmra.mxu0 %v768
        %v872 = vpop.f32.mrf.mxu0
        %v873 = vadd.f32 %v761, %v872
        %874 = vdwg.mxu0
        %v875 = vmax.f32 %v801, 0.0
        %v876 = vmax.f32 %v824, 0.0
        %v877 = vmax.f32 %v847, 0.0
        %v878 = vmax.f32 %v870, 0.0
        %v879 = vmax.f32 %v804, 0.0
        %v880 = vmax.f32 %v827, 0.0
        %v881 = vmax.f32 %v850, 0.0
        %v882 = vmax.f32 %v873, 0.0
        %v883 = vld [vmem:[%s2 + $0x50] sm:$0x3]
        %v884 = vld [vmem:[%s3 + $0x40] sm:$0x3]
        %886 = vset.pattern.permute.xlu0 0
        %887 = vperm.xlu0 %886, %v884
        %v888 = vpop.permute.xlu0 %887
        %v891 = vsel %vm499, %v883, 0
        %v894 = vsel %vm506, %v879, 0
        %v897 = vsel %vm506, %v880, 0
        %v900 = vsel %vm506, %v881, 0
        %v903 = vsel %vm506, %v882, 0
        %905 = vmatpush.msra.mxu0 0.0
        %906 = vmatpush.msra.mxu0 0.0
        %907 = vmatpush.msra.mxu0 0.0
        %908 = vmatpush.msra.mxu0 0.0
        %909 = vmatpush.msra.mxu0 0.0
        %910 = vmatpush.msra.mxu0 0.0
        %911 = vmatpush.msra.mxu0 0.0
        %912 = vmatpush.msra.mxu0 0.0
        %913 = vmatpush.msra.mxu0 0.0
        %914 = vmatpush.msra.mxu0 0.0
        %915 = vmatpush.msra.mxu0 0.0
        %916 = vmatpush.msra.mxu0 0.0
        %917 = vmatpush.msra.mxu0 0.0
        %918 = vmatpush.msra.mxu0 0.0
        %919 = vmatpush.msra.mxu0 %v894
        %920 = vmatpush.msra.mxu0 %v875
        %921 = vmatmul.f32.gmra.mxu0 %v891
        %v922 = vpop.f32.mrf.mxu0
        %v923 = vadd.f32 %v888, %v922
        %924 = vdwg.mxu0
        %925 = vmatpush.msra.mxu0 0.0
        %926 = vmatpush.msra.mxu0 0.0
        %927 = vmatpush.msra.mxu0 0.0
        %928 = vmatpush.msra.mxu0 0.0
        %929 = vmatpush.msra.mxu0 0.0
        %930 = vmatpush.msra.mxu0 0.0
        %931 = vmatpush.msra.mxu0 0.0
        %932 = vmatpush.msra.mxu0 0.0
        %933 = vmatpush.msra.mxu0 0.0
        %934 = vmatpush.msra.mxu0 0.0
        %935 = vmatpush.msra.mxu0 0.0
        %936 = vmatpush.msra.mxu0 0.0
        %937 = vmatpush.msra.mxu0 0.0
        %938 = vmatpush.msra.mxu0 0.0
        %939 = vmatpush.msra.mxu0 %v897
        %940 = vmatpush.msra.mxu0 %v876
        %941 = vmatmul.f32.gmra.mxu0 %v891
        %v942 = vpop.f32.mrf.mxu0
        %v943 = vadd.f32 %v888, %v942
        %944 = vdwg.mxu0
        %945 = vmatpush.msra.mxu0 0.0
        %946 = vmatpush.msra.mxu0 0.0
        %947 = vmatpush.msra.mxu0 0.0
        %948 = vmatpush.msra.mxu0 0.0
        %949 = vmatpush.msra.mxu0 0.0
        %950 = vmatpush.msra.mxu0 0.0
        %951 = vmatpush.msra.mxu0 0.0
        %952 = vmatpush.msra.mxu0 0.0
        %953 = vmatpush.msra.mxu0 0.0
        %954 = vmatpush.msra.mxu0 0.0
        %955 = vmatpush.msra.mxu0 0.0
        %956 = vmatpush.msra.mxu0 0.0
        %957 = vmatpush.msra.mxu0 0.0
        %958 = vmatpush.msra.mxu0 0.0
        %959 = vmatpush.msra.mxu0 %v900
        %960 = vmatpush.msra.mxu0 %v877
        %961 = vmatmul.f32.gmra.mxu0 %v891
        %v962 = vpop.f32.mrf.mxu0
        %v963 = vadd.f32 %v888, %v962
        %964 = vdwg.mxu0
        %965 = vmatpush.msra.mxu0 0.0
        %966 = vmatpush.msra.mxu0 0.0
        %967 = vmatpush.msra.mxu0 0.0
        %968 = vmatpush.msra.mxu0 0.0
        %969 = vmatpush.msra.mxu0 0.0
        %970 = vmatpush.msra.mxu0 0.0
        %971 = vmatpush.msra.mxu0 0.0
        %972 = vmatpush.msra.mxu0 0.0
        %973 = vmatpush.msra.mxu0 0.0
        %974 = vmatpush.msra.mxu0 0.0
        %975 = vmatpush.msra.mxu0 0.0
        %976 = vmatpush.msra.mxu0 0.0
        %977 = vmatpush.msra.mxu0 0.0
        %978 = vmatpush.msra.mxu0 0.0
        %979 = vmatpush.msra.mxu0 %v903
        %980 = vmatpush.msra.mxu0 %v878
        %981 = vmatmul.f32.gmra.mxu0 %v891
        %v982 = vpop.f32.mrf.mxu0
        %v983 = vadd.f32 %v888, %v982
        %984 = vdwg.mxu0
        %v989 = vrot.slane %v943, 6
        %v990 = vrot.slane %v963, 4
        %v991 = vrot.slane %v983, 2
        %v992 = vsel %vm506, %v923, %v989
        %vm993 = vcmask 1045508
        %v994 = vsel %vm993, %v990, %v991
        %vm995 = vcmask 1043456
        %v996 = vsel %vm995, %v992, %v994
        %998 = vst [vmem:[%s207] sm:$0xff] %v996
        %s999 = sand.u32 %s120, 1
        %s1000 = scalar_lea.sflag [#allocation3], %s999
        %s1001 = sand.u32 %s120, 1
        %s1002 = smul.addr %s1001, 8
        %s1003 = scalar_lea.vmem [#allocation2], %s1002
        // Predicated region
        $region37: #{tpu_custom_call.1} parent=35 // pred_check
          %p1004 = pneg %p130
        $region38: #{tpu_custom_call.1} parent=35 // pred_check_branch
          %1006 = sbr.rel (%p1004) target = $region40
        $region39: #{tpu_custom_call.1} parent=35 // pred_region
          %s1007 = smul.u32 4, %s18
          %1009 = vsyncadd %s1000, 0
          %s1010 = smul.addr %s1007, 2
          %s1011 = scalar_lea.hbm %s4, %s1010
          %s1013 = sshll.u32 %s1003, 4
          %s1014 = int_to_ptr.vmem [resolvable:$true] %s1013
          %s1015 = sshll.u32 %s1011, 4
          %s1016 = int_to_ptr.hbm [resolvable:$true] %s1015
          %1018 = dma.vmem_to_hbm [thread:$0]  %s1014, 128, %s1016, %s1000
        $region40: #{tpu_custom_call.1} parent=35 // pred_fallthru
          _
      $region36: #{tpu_custom_call.1} parent=5 // pred_fallthru
        _
      %p1019 = scmp.le.s32.totalorder 2, %s13
      // Predicated region
      $region41: #{tpu_custom_call.1} parent=5 // pred_check
        %p1020 = pneg %p1019
      $region42: #{tpu_custom_call.1} parent=5 // pred_check_branch
        %1022 = sbr.rel (%p1020) target = $region44
      $region43: #{tpu_custom_call.1} parent=5 // pred_region
        %s1023 = ssub.s32 %s13, 2
        // Predicated region
        $region45: #{tpu_custom_call.1} parent=43 // pred_check
          %p1024 = pneg %p136
        $region46: #{tpu_custom_call.1} parent=43 // pred_check_branch
          %1026 = sbr.rel (%p1024) target = $region48
        $region47: #{tpu_custom_call.1} parent=43 // pred_region
          %s1027 = sand.u32 %s121, 1
          %s1028 = scalar_lea.sflag [#allocation3], %s1027
          %s1029 = sand.u32 %s121, 1
          %s1030 = smul.addr %s1029, 8
          %s1031 = scalar_lea.vmem [#allocation2], %s1030
          %1033 = dma.done %s1028, 128
        $region48: #{tpu_custom_call.1} parent=43 // pred_fallthru
          _
      $region44: #{tpu_custom_call.1} parent=5 // pred_fallthru
        _
    $region6: #{tpu_custom_call.1} parent=1 // loop_footer
      %s17 = sadd.s32 1, %s13
    $region7: #{tpu_custom_call.1} parent=1 // loop_footer_branch
      %12 = sbr.rel target = $region3
    $region8: #{tpu_custom_call.1} parent=1 // loop_exit
      _
    %1034 = vsyncpa [#allocation3], 1
    %s1035 = scalar_lea.sflag [#allocation3], 1
    %1036 = vsyncpa %s1035, 1

</llo_original>
